<compile_context>
chip_gen: v7x
topology: tpu7x:2x2x1
jax: 0.10.0
libtpu: 0.0.40
codegen_flags: <defaults>
</compile_context>

<pallas_src>
import math

import jax
import jax.numpy as jnp
from jax import lax
from jax.experimental import pallas as pl
from jax.experimental.pallas import tpu as pltpu


def fixed_embedding_kernel(idx_ref, w_ref, o_ref):
    # idx_ref: (rows, pack) int32 -- token indices, pre-shifted by slot*c_in
    # w_ref:   (pack*c_in, pack*d_model) f32 -- block-diagonal sinusoidal table
    # o_ref:   (rows, pack*d_model) f32 -- `pack` embeddings per 128-lane row
    rows, pack = idx_ref.shape
    kdim = w_ref.shape[0]
    idx = idx_ref[...]
    cols = lax.broadcasted_iota(jnp.int32, (rows, kdim), 1)
    # Multi-hot over the packed vocabulary axis: slot j of a packed row selects
    # a column inside [j*c_in, (j+1)*c_in), so per-slot one-hots are disjoint
    # and can be summed.  `pack` is a small static constant -> unrolled VPU ops.
    onehot = (idx[:, 0:1] == cols).astype(jnp.float32)
    for j in range(1, pack):
        onehot = onehot + (idx[:, j:j + 1] == cols).astype(jnp.float32)
    o_ref[...] = jnp.dot(
        onehot, w_ref[...], preferred_element_type=jnp.float32
    ).astype(o_ref.dtype)


def make_fixed_table(c_in, d_model):
    """Deterministic sinusoidal table, matching FixedEmbedding.__init__."""
    assert d_model % 2 == 0, "FixedEmbedding expects an even d_model"
    position = jnp.arange(c_in, dtype=jnp.float32)[:, None]            # (c_in, 1)
    div_term = jnp.exp(
        jnp.arange(0, d_model, 2, dtype=jnp.float32)
        * -(math.log(10000.0) / d_model)
    )                                                                   # (d_model//2,)
    w = jnp.zeros((c_in, d_model), dtype=jnp.float32)
    w = w.at[:, 0::2].set(jnp.sin(position * div_term))
    w = w.at[:, 1::2].set(jnp.cos(position * div_term))
    return w


def _pack_table(w, pack):
    """Block-diagonal replication: (c_in, d) -> (pack*c_in, pack*d)."""
    if pack == 1:
        return w.astype(jnp.float32)
    c_in, d_model = w.shape
    wp = jnp.zeros((pack * c_in, pack * d_model), jnp.float32)
    for j in range(pack):
        wp = wp.at[j * c_in:(j + 1) * c_in,
                   j * d_model:(j + 1) * d_model].set(w)
    return wp


def _block_vmem_bytes(tile, pack, c_in, d_model, single_buffer_table):
    rows = tile // pack
    table = (pack * c_in) * (pack * d_model) * 4 * (1 if single_buffer_table else 2)
    idx_blk = 2 * rows * pack * 4                 # double-buffered input
    out_blk = 2 * rows * (pack * d_model) * 4     # double-buffered output
    return table + idx_blk + out_blk


def fixed_embedding(x, w, *, tile=256):
    """x: integer indices (any shape) -> x.shape + (d_model,) float32 lookup."""
    c_in, d_model = w.shape
    lead_shape = x.shape
    N = int(math.prod(lead_shape)) if lead_shape else 1

    # --- lane packing: put `pack` tokens into one 128-lane output row --------
    pack = 128 // d_model if (0 < d_model < 128 and 128 % d_model == 0) else 1
    if pack > 1 and (pack * c_in) * (pack * d_model) * 4 > (4 << 20):
        pack = 1  # block-diagonal table would be too large to keep resident
    min_tile = 8 * pack  # keeps the packed-row (sublane) block dim a multiple of 8

    # --- tile selection: big (>=128) but within a per-generation VMEM budget --
    tile = max(min_tile, (int(tile) // min_tile) * min_tile)
    # v7x is the binding VMEM constraint (64 MiB physical / 32 MiB default
    # scoped); keep double-buffered blocks + the resident table well under it.
    vmem_budget = 24 << 20
    while tile // 2 >= min_tile and _block_vmem_bytes(
            tile, pack, c_in, d_model, True) > vmem_budget:
        tile //= 2
    # keep >= 2 grid steps when there is enough work so the "parallel" grid
    # axis can split across v7x's two TensorCores (v5e/v6e: 1 TC, unaffected).
    while tile // 2 >= max(min_tile, 128) and pl.cdiv(N, tile) < 2:
        tile //= 2
    tile = max(min_tile, (tile // min_tile) * min_tile)

    rows = tile // pack                      # packed rows per grid step
    num_tiles = pl.cdiv(N, tile)
    n_pad = num_tiles * tile                 # padded flattened token count
    n_groups = n_pad // pack                 # total packed output rows

    # --- index prep (plain JAX, wrapper side) --------------------------------
    idx = x.reshape(N).astype(jnp.int32)
    if n_pad != N:
        idx = jnp.pad(idx, (0, n_pad - N))   # padded tokens -> index 0, sliced off
    # pre-shift slot j of each packed row by j*c_in so it selects its own block
    # of the block-diagonal packed table
    shift = (jnp.arange(n_pad, dtype=jnp.int32) % pack) * c_in
    idx2d = (idx + shift).reshape(n_groups, pack)

    w_packed = _pack_table(w, pack)

    def build_call(single_buffer_table):
        table_kwargs = {}
        if single_buffer_table:
            # Constant index_map -> the table block is revisited every step and
            # needs no double-buffering; halves its VMEM footprint.
            table_kwargs["pipeline_mode"] = pl.Buffered(1)
        return pl.pallas_call(
            fixed_embedding_kernel,
            out_shape=jax.ShapeDtypeStruct((n_groups, pack * d_model), jnp.float32),
            grid=(num_tiles,),
            in_specs=[
                pl.BlockSpec((rows, pack), lambda i: (i, 0)),
                pl.BlockSpec((pack * c_in, pack * d_model), lambda i: (0, 0),
                             **table_kwargs),
            ],
            out_specs=pl.BlockSpec((rows, pack * d_model), lambda i: (i, 0)),
            compiler_params=pltpu.CompilerParams(
                dimension_semantics=("parallel",),
                vmem_limit_bytes=32 * 1024 * 1024,
            ),
        )

    try:
        out_packed = build_call(True)(idx2d, w_packed)
    except Exception:
        # Fallback for toolchains that reject pipeline_mode=pl.Buffered(1);
        # only costs one extra (small) copy of the table in VMEM.
        out_packed = build_call(False)(idx2d, w_packed)

    out = out_packed.reshape(n_pad, d_model)[:N]
    return out.reshape(*lead_shape, d_model)


if __name__ == "__main__":
    c_in = 32      # vocabulary (e.g. number of discrete time-feature values)
    d_model = 32   # embedding dim
    B, L = 2, 8    # batch, sequence length

    key = jax.random.PRNGKey(0)
    x = jax.random.randint(key, (B, L), 0, c_in, dtype=jnp.int32)

    w = make_fixed_table(c_in, d_model)

    out = jax.block_until_ready(fixed_embedding(x, w))

    # Reference: plain JAX gather (same semantics as nn.Embedding forward).
    ref = w[x]
    assert out.shape == (B, L, d_model)
    assert jnp.allclose(out, ref, atol=1e-6), "mismatch vs reference gather"

    print("KERNEL_OK")
</pallas_src>

<mosaic_0001>
module attributes {stable_mosaic.version = 11 : i64} {
  func.func @fixed_embedding_kernel(%arg0: i32, %arg1: memref<32x4xi32, #tpu.memory_space<vmem>>, %arg2: memref<128x128xf32, #tpu.memory_space<vmem>>, %arg3: memref<32x128xf32, #tpu.memory_space<vmem>>) attributes {dimension_semantics = [#tpu.dimension_semantics<parallel>], iteration_bounds = array<i64: 1>, scalar_prefetch = 0 : i64, scratch_operands = 0 : i64, tpu.core_type = #tpu.core_type<tc>, window_params = [{transform_indices = @transform_0, window_bounds = array<i64: 32, 4>}, {pipeline_mode = #tpu.pipeline_mode<synchronous>, transform_indices = @transform_1, window_bounds = array<i64: 128, 128>}, {transform_indices = @transform_2, window_bounds = array<i64: 32, 128>}]} {
    %c0 = arith.constant 0 : index
    %c0_0 = arith.constant 0 : index
    %0 = vector.load %arg1[%c0, %c0_0] : memref<32x4xi32, #tpu.memory_space<vmem>>, vector<32x4xi32>
    %1 = tpu.iota {dimensions = array<i32: 1>} : vector<32x128xi32>
    %2 = vector.extract_strided_slice %0 {offsets = [0, 0], sizes = [32, 1], strides = [1, 1]} : vector<32x4xi32> to vector<32x1xi32>
    %3 = vector.broadcast %2 : vector<32x1xi32> to vector<32x128xi32>
    %4 = arith.cmpi eq, %3, %1 : vector<32x128xi32>
    %5 = arith.extui %4 : vector<32x128xi1> to vector<32x128xi32>
    %6 = arith.sitofp %5 : vector<32x128xi32> to vector<32x128xf32>
    %7 = vector.extract_strided_slice %0 {offsets = [0, 1], sizes = [32, 1], strides = [1, 1]} : vector<32x4xi32> to vector<32x1xi32>
    %8 = vector.broadcast %7 : vector<32x1xi32> to vector<32x128xi32>
    %9 = arith.cmpi eq, %8, %1 : vector<32x128xi32>
    %10 = arith.extui %9 : vector<32x128xi1> to vector<32x128xi32>
    %11 = arith.sitofp %10 : vector<32x128xi32> to vector<32x128xf32>
    %12 = arith.addf %6, %11 : vector<32x128xf32>
    %13 = vector.extract_strided_slice %0 {offsets = [0, 2], sizes = [32, 1], strides = [1, 1]} : vector<32x4xi32> to vector<32x1xi32>
    %14 = vector.broadcast %13 : vector<32x1xi32> to vector<32x128xi32>
    %15 = arith.cmpi eq, %14, %1 : vector<32x128xi32>
    %16 = arith.extui %15 : vector<32x128xi1> to vector<32x128xi32>
    %17 = arith.sitofp %16 : vector<32x128xi32> to vector<32x128xf32>
    %18 = arith.addf %12, %17 : vector<32x128xf32>
    %19 = vector.extract_strided_slice %0 {offsets = [0, 3], sizes = [32, 1], strides = [1, 1]} : vector<32x4xi32> to vector<32x1xi32>
    %20 = vector.broadcast %19 : vector<32x1xi32> to vector<32x128xi32>
    %21 = arith.cmpi eq, %20, %1 : vector<32x128xi32>
    %22 = arith.extui %21 : vector<32x128xi1> to vector<32x128xi32>
    %23 = arith.sitofp %22 : vector<32x128xi32> to vector<32x128xf32>
    %24 = arith.addf %18, %23 : vector<32x128xf32>
    %c0_1 = arith.constant 0 : index
    %c0_2 = arith.constant 0 : index
    %25 = vector.load %arg2[%c0_1, %c0_2] : memref<128x128xf32, #tpu.memory_space<vmem>>, vector<128x128xf32>
    %cst = arith.constant dense<0.000000e+00> : vector<32x128xf32>
    %26 = tpu.matmul %24, %25, %cst {dimension_numbers = #tpu.dot_dimension_numbers<[1], [0], [0], [1], [0, 0, 1, 1], [], []>} : vector<32x128xf32>, vector<128x128xf32>, vector<32x128xf32> -> vector<32x128xf32>
    %c0_3 = arith.constant 0 : index
    %c0_4 = arith.constant 0 : index
    %27 = vector.load %arg3[%c0_3, %c0_4] : memref<32x128xf32, #tpu.memory_space<vmem>>, vector<32x128xf32>
    tpu.vector_store %arg3[%c0_3, %c0_4], %26 {strides = array<i32>} : memref<32x128xf32, #tpu.memory_space<vmem>>, vector<32x128xf32>,
    return
  }
  func.func @transform_0(%arg0: i32) -> (i32, i32) {
    %c0_i32 = arith.constant 0 : i32
    %c0_i32_0 = arith.constant 0 : i32
    return %arg0, %c0_i32 : i32, i32
  }
  func.func @transform_1(%arg0: i32) -> (i32, i32) {
    %c0_i32 = arith.constant 0 : i32
    %c0_i32_0 = arith.constant 0 : i32
    %c0_i32_1 = arith.constant 0 : i32
    return %c0_i32, %c0_i32_0 : i32, i32
  }
  func.func @transform_2(%arg0: i32) -> (i32, i32) {
    %c0_i32 = arith.constant 0 : i32
    %c0_i32_0 = arith.constant 0 : i32
    return %arg0, %c0_i32 : i32, i32
  }
}

module attributes {stable_mosaic.version = 11 : i64} {
  func.func @fixed_embedding_kernel(%arg0: i32, %arg1: memref<32x4xi32, #tpu.memory_space<vmem>>, %arg2: memref<128x128xf32, #tpu.memory_space<vmem>>, %arg3: memref<32x128xf32, #tpu.memory_space<vmem>>) attributes {dimension_semantics = [#tpu.dimension_semantics<parallel>], iteration_bounds = array<i64: 1>, scalar_prefetch = 0 : i64, scratch_operands = 0 : i64, tpu.core_type = #tpu.core_type<tc>, window_params = [{transform_indices = @transform_0, window_bounds = array<i64: 32, 4>}, {pipeline_mode = #tpu.pipeline_mode<synchronous>, transform_indices = @transform_1, window_bounds = array<i64: 128, 128>}, {transform_indices = @transform_2, window_bounds = array<i64: 32, 128>}]} {
    %c0 = arith.constant 0 : index
    %c0_0 = arith.constant 0 : index
    %0 = vector.load %arg1[%c0, %c0_0] : memref<32x4xi32, #tpu.memory_space<vmem>>, vector<32x4xi32>
    %1 = tpu.iota {dimensions = array<i32: 1>} : vector<32x128xi32>
    %2 = vector.extract_strided_slice %0 {offsets = [0, 0], sizes = [32, 1], strides = [1, 1]} : vector<32x4xi32> to vector<32x1xi32>
    %3 = vector.broadcast %2 : vector<32x1xi32> to vector<32x128xi32>
    %4 = arith.cmpi eq, %3, %1 : vector<32x128xi32>
    %5 = arith.extui %4 : vector<32x128xi1> to vector<32x128xi32>
    %6 = arith.sitofp %5 : vector<32x128xi32> to vector<32x128xf32>
    %7 = vector.extract_strided_slice %0 {offsets = [0, 1], sizes = [32, 1], strides = [1, 1]} : vector<32x4xi32> to vector<32x1xi32>
    %8 = vector.broadcast %7 : vector<32x1xi32> to vector<32x128xi32>
    %9 = arith.cmpi eq, %8, %1 : vector<32x128xi32>
    %10 = arith.extui %9 : vector<32x128xi1> to vector<32x128xi32>
    %11 = arith.sitofp %10 : vector<32x128xi32> to vector<32x128xf32>
    %12 = arith.addf %6, %11 : vector<32x128xf32>
    %13 = vector.extract_strided_slice %0 {offsets = [0, 2], sizes = [32, 1], strides = [1, 1]} : vector<32x4xi32> to vector<32x1xi32>
    %14 = vector.broadcast %13 : vector<32x1xi32> to vector<32x128xi32>
    %15 = arith.cmpi eq, %14, %1 : vector<32x128xi32>
    %16 = arith.extui %15 : vector<32x128xi1> to vector<32x128xi32>
    %17 = arith.sitofp %16 : vector<32x128xi32> to vector<32x128xf32>
    %18 = arith.addf %12, %17 : vector<32x128xf32>
    %19 = vector.extract_strided_slice %0 {offsets = [0, 3], sizes = [32, 1], strides = [1, 1]} : vector<32x4xi32> to vector<32x1xi32>
    %20 = vector.broadcast %19 : vector<32x1xi32> to vector<32x128xi32>
    %21 = arith.cmpi eq, %20, %1 : vector<32x128xi32>
    %22 = arith.extui %21 : vector<32x128xi1> to vector<32x128xi32>
    %23 = arith.sitofp %22 : vector<32x128xi32> to vector<32x128xf32>
    %24 = arith.addf %18, %23 : vector<32x128xf32>
    %c0_1 = arith.constant 0 : index
    %c0_2 = arith.constant 0 : index
    %25 = vector.load %arg2[%c0_1, %c0_2] : memref<128x128xf32, #tpu.memory_space<vmem>>, vector<128x128xf32>
    %cst = arith.constant dense<0.000000e+00> : vector<32x128xf32>
    %26 = tpu.matmul %24, %25, %cst {dimension_numbers = #tpu.dot_dimension_numbers<[1], [0], [0], [1], [0, 0, 1, 1], [], []>} : vector<32x128xf32>, vector<128x128xf32>, vector<32x128xf32> -> vector<32x128xf32>
    %c0_3 = arith.constant 0 : index
    %c0_4 = arith.constant 0 : index
    %27 = vector.load %arg3[%c0_3, %c0_4] : memref<32x128xf32, #tpu.memory_space<vmem>>, vector<32x128xf32>
    tpu.vector_store %arg3[%c0_3, %c0_4], %26 {strides = array<i32>} : memref<32x128xf32, #tpu.memory_space<vmem>>, vector<32x128xf32>,
    return
  }
  func.func @transform_0(%arg0: i32) -> (i32, i32) {
    %c0_i32 = arith.constant 0 : i32
    %c0_i32_0 = arith.constant 0 : i32
    return %arg0, %c0_i32 : i32, i32
  }
  func.func @transform_1(%arg0: i32) -> (i32, i32) {
    %c0_i32 = arith.constant 0 : i32
    %c0_i32_0 = arith.constant 0 : i32
    %c0_i32_1 = arith.constant 0 : i32
    return %c0_i32, %c0_i32_0 : i32, i32
  }
  func.func @transform_2(%arg0: i32) -> (i32, i32) {
    %c0_i32 = arith.constant 0 : i32
    %c0_i32_0 = arith.constant 0 : i32
    return %arg0, %c0_i32 : i32, i32
  }
}

</mosaic_0001>

<llo_original>
// kernel: tpu_custom_call.1
$region0: #{tpu_custom_call.1}
  #allocation0 [shape = 'u32[]', space=smem, size = 0x4, offset = 0x4, fixed_abs, tag = 'smem constant byte address 0x4 - core index']
  #allocation1 [shape = 'u32[144,128]{1,0:T(1,128)}', space=vmem, size = 0x12000, scoped, tag = 'internal scratch']
  %s0 = inlined_call_operand.vmem [shape: s32[32,4], index: 0, kind: input, shape index: {}]
  %s1 = inlined_call_operand.hbm [shape: f32[128,128], index: 1, kind: input, shape index: {}]
  %s2 = inlined_call_operand.hbm [shape: f32[32,128], index: 2, kind: output, shape index: {}]
  %s3 = sld [smem:[#allocation0]]
  $region22: #{tpu_custom_call.1} parent=0
    _
  %s5 = ssub.s32 1, %s3
  %s6 = scalar_select 0, %s5, %s3
  $region1: #{tpu_custom_call.1} parent=0
    #allocation2 [shape = 'u8[65536]{0}', space=vmem, size = 0x10000, scoped, tag = 'input window, operand 1, single buffered']
    #allocation3 [shape = 's32[1]{0}', space=sflag, size = 0x4, scoped, tag = 'scoped memory for tpu_custom_call.1']
    #allocation4 [shape = 's32[1]{0}', space=sflag, size = 0x4, scoped, tag = 'scoped memory for tpu_custom_call.1']
    #allocation5 [shape = 'u8[16384]{0}', space=vmem, size = 0x4000, scoped, tag = 'output window, operand 0, single buffered']
    %7 = vsyncpa [#allocation3], 0
    %8 = vsyncpa [#allocation4], 0
    // Predicated region
    $region2: #{tpu_custom_call.1} parent=1 // pred_check
      _
    $region3: #{tpu_custom_call.1} parent=1 // pred_check_branch
      %10 = sbr.rel (0) target = $region5
    $region4: #{tpu_custom_call.1} parent=1 // pred_region
      _
    $region5: #{tpu_custom_call.1} parent=1 // pred_fallthru
      _
    // Predicated region
    $region6: #{tpu_custom_call.1} parent=1 // pred_check
      _
    $region7: #{tpu_custom_call.1} parent=1 // pred_check_branch
      %12 = sbr.rel (0) target = $region9
    $region8: #{tpu_custom_call.1} parent=1 // pred_region
      %s14 = ssub.s32 2048, 2048
      %15 = vsyncadd [#allocation3], %s14
      %s16 = sshll.u32 [#allocation2], 4
      %s17 = int_to_ptr.vmem [resolvable:$true] %s16
      %22 = dma.hbm_to_vmem [thread:$0]  %s1, 2048, %s17, [#allocation3], 128, 128, 8
    $region9: #{tpu_custom_call.1} parent=1 // pred_fallthru
      _
    // Predicated region
    $region10: #{tpu_custom_call.1} parent=1 // pred_check
      _
    $region11: #{tpu_custom_call.1} parent=1 // pred_check_branch
      %24 = sbr.rel (0) target = $region13
    $region12: #{tpu_custom_call.1} parent=1 // pred_region
      %25 = dma.done [#allocation3], 2048
    $region13: #{tpu_custom_call.1} parent=1 // pred_fallthru
      _
    %v26 = vld [vmem:[%s0] sm:$0xff]
    %v27 = vld [vmem:[%s0 + $0x8] sm:$0xff]
    %v28 = vld [vmem:[%s0 + $0x10] sm:$0xff]
    %v29 = vld [vmem:[%s0 + $0x18] sm:$0xff]
    %v30 = vlaneseq
    %v31 = vand.u32 %v30, 127
    %32 = vset.pattern.permute.xlu0 0
    %33 = vperm.xlu0 %32, %v26
    %v34 = vpop.permute.xlu0 %33
    %35 = vset.pattern.permute.xlu0 0
    %36 = vperm.xlu0 %35, %v27
    %v37 = vpop.permute.xlu0 %36
    %38 = vset.pattern.permute.xlu0 0
    %39 = vperm.xlu0 %38, %v28
    %v40 = vpop.permute.xlu0 %39
    %41 = vset.pattern.permute.xlu0 0
    %42 = vperm.xlu0 %41, %v29
    %v43 = vpop.permute.xlu0 %42
    %vm44 = vcmp.eq.s32.totalorder %v34, %v31
    %vm45 = vcmp.eq.s32.totalorder %v37, %v31
    %vm46 = vcmp.eq.s32.totalorder %v40, %v31
    %vm47 = vcmp.eq.s32.totalorder %v43, %v31
    %v48 = vsel %vm44, 1, 0
    %v49 = vsel %vm45, 1, 0
    %v50 = vsel %vm46, 1, 0
    %v51 = vsel %vm47, 1, 0
    %v52 = vcvt.s32.f32 %v48
    %v53 = vcvt.s32.f32 %v49
    %v54 = vcvt.s32.f32 %v50
    %v55 = vcvt.s32.f32 %v51
    %56 = vset.pattern.permute.xlu0 1
    %57 = vperm.xlu0 %56, %v26
    %v58 = vpop.permute.xlu0 %57
    %59 = vset.pattern.permute.xlu0 1
    %60 = vperm.xlu0 %59, %v27
    %v61 = vpop.permute.xlu0 %60
    %62 = vset.pattern.permute.xlu0 1
    %63 = vperm.xlu0 %62, %v28
    %v64 = vpop.permute.xlu0 %63
    %65 = vset.pattern.permute.xlu0 1
    %66 = vperm.xlu0 %65, %v29
    %v67 = vpop.permute.xlu0 %66
    %vm68 = vcmp.eq.s32.totalorder %v58, %v31
    %vm69 = vcmp.eq.s32.totalorder %v61, %v31
    %vm70 = vcmp.eq.s32.totalorder %v64, %v31
    %vm71 = vcmp.eq.s32.totalorder %v67, %v31
    %v72 = vsel %vm68, 1, 0
    %v73 = vsel %vm69, 1, 0
    %v74 = vsel %vm70, 1, 0
    %v75 = vsel %vm71, 1, 0
    %v76 = vcvt.s32.f32 %v72
    %v77 = vcvt.s32.f32 %v73
    %v78 = vcvt.s32.f32 %v74
    %v79 = vcvt.s32.f32 %v75
    %v80 = vadd.f32 %v52, %v76
    %v81 = vadd.f32 %v53, %v77
    %v82 = vadd.f32 %v54, %v78
    %v83 = vadd.f32 %v55, %v79
    %84 = vset.pattern.permute.xlu0 2
    %85 = vperm.xlu0 %84, %v26
    %v86 = vpop.permute.xlu0 %85
    %87 = vset.pattern.permute.xlu0 2
    %88 = vperm.xlu0 %87, %v27
    %v89 = vpop.permute.xlu0 %88
    %90 = vset.pattern.permute.xlu0 2
    %91 = vperm.xlu0 %90, %v28
    %v92 = vpop.permute.xlu0 %91
    %93 = vset.pattern.permute.xlu0 2
    %94 = vperm.xlu0 %93, %v29
    %v95 = vpop.permute.xlu0 %94
    %vm96 = vcmp.eq.s32.totalorder %v86, %v31
    %vm97 = vcmp.eq.s32.totalorder %v89, %v31
    %vm98 = vcmp.eq.s32.totalorder %v92, %v31
    %vm99 = vcmp.eq.s32.totalorder %v95, %v31
    %v100 = vsel %vm96, 1, 0
    %v101 = vsel %vm97, 1, 0
    %v102 = vsel %vm98, 1, 0
    %v103 = vsel %vm99, 1, 0
    %v104 = vcvt.s32.f32 %v100
    %v105 = vcvt.s32.f32 %v101
    %v106 = vcvt.s32.f32 %v102
    %v107 = vcvt.s32.f32 %v103
    %v108 = vadd.f32 %v80, %v104
    %v109 = vadd.f32 %v81, %v105
    %v110 = vadd.f32 %v82, %v106
    %v111 = vadd.f32 %v83, %v107
    %112 = vset.pattern.permute.xlu0 3
    %113 = vperm.xlu0 %112, %v26
    %v114 = vpop.permute.xlu0 %113
    %115 = vset.pattern.permute.xlu0 3
    %116 = vperm.xlu0 %115, %v27
    %v117 = vpop.permute.xlu0 %116
    %118 = vset.pattern.permute.xlu0 3
    %119 = vperm.xlu0 %118, %v28
    %v120 = vpop.permute.xlu0 %119
    %121 = vset.pattern.permute.xlu0 3
    %122 = vperm.xlu0 %121, %v29
    %v123 = vpop.permute.xlu0 %122
    %vm124 = vcmp.eq.s32.totalorder %v114, %v31
    %vm125 = vcmp.eq.s32.totalorder %v117, %v31
    %vm126 = vcmp.eq.s32.totalorder %v120, %v31
    %vm127 = vcmp.eq.s32.totalorder %v123, %v31
    %v128 = vsel %vm124, 1, 0
    %v129 = vsel %vm125, 1, 0
    %v130 = vsel %vm126, 1, 0
    %v131 = vsel %vm127, 1, 0
    %v132 = vcvt.s32.f32 %v128
    %v133 = vcvt.s32.f32 %v129
    %v134 = vcvt.s32.f32 %v130
    %v135 = vcvt.s32.f32 %v131
    %v136 = vadd.f32 %v108, %v132
    %v137 = vadd.f32 %v109, %v133
    %v138 = vadd.f32 %v110, %v134
    %v139 = vadd.f32 %v111, %v135
    %v140 = vld [vmem:[#allocation2] sm:$0xff]
    %v141 = vld [vmem:[#allocation2 + $0x8] sm:$0xff]
    %v142 = vld [vmem:[#allocation2 + $0x10] sm:$0xff]
    %v143 = vld [vmem:[#allocation2 + $0x18] sm:$0xff]
    %v144 = vld [vmem:[#allocation2 + $0x20] sm:$0xff]
    %v145 = vld [vmem:[#allocation2 + $0x28] sm:$0xff]
    %v146 = vld [vmem:[#allocation2 + $0x30] sm:$0xff]
    %v147 = vld [vmem:[#allocation2 + $0x38] sm:$0xff]
    %v148 = vld [vmem:[#allocation2 + $0x40] sm:$0xff]
    %v149 = vld [vmem:[#allocation2 + $0x48] sm:$0xff]
    %v150 = vld [vmem:[#allocation2 + $0x50] sm:$0xff]
    %v151 = vld [vmem:[#allocation2 + $0x58] sm:$0xff]
    %v152 = vld [vmem:[#allocation2 + $0x60] sm:$0xff]
    %v153 = vld [vmem:[#allocation2 + $0x68] sm:$0xff]
    %v154 = vld [vmem:[#allocation2 + $0x70] sm:$0xff]
    %v155 = vld [vmem:[#allocation2 + $0x78] sm:$0xff]
    %156 = vmatprep.subr.mxu0 0.0
    %157 = vmatpush1.msra.mxu0 %v140
    %158 = vmatprep.subr.mxu0 0.0
    %159 = vmatpush1.msra.mxu0 %v141
    %160 = vmatprep.subr.mxu0 0.0
    %161 = vmatpush1.msra.mxu0 %v142
    %162 = vmatprep.subr.mxu0 0.0
    %163 = vmatpush1.msra.mxu0 %v143
    %164 = vmatprep.subr.mxu0 0.0
    %165 = vmatpush1.msra.mxu0 %v144
    %166 = vmatprep.subr.mxu0 0.0
    %167 = vmatpush1.msra.mxu0 %v145
    %168 = vmatprep.subr.mxu0 0.0
    %169 = vmatpush1.msra.mxu0 %v146
    %170 = vmatprep.subr.mxu0 0.0
    %171 = vmatpush1.msra.mxu0 %v147
    %172 = vmatprep.subr.mxu0 0.0
    %173 = vmatpush1.msra.mxu0 %v148
    %174 = vmatprep.subr.mxu0 0.0
    %175 = vmatpush1.msra.mxu0 %v149
    %176 = vmatprep.subr.mxu0 0.0
    %177 = vmatpush1.msra.mxu0 %v150
    %178 = vmatprep.subr.mxu0 0.0
    %179 = vmatpush1.msra.mxu0 %v151
    %180 = vmatprep.subr.mxu0 0.0
    %181 = vmatpush1.msra.mxu0 %v152
    %182 = vmatprep.subr.mxu0 0.0
    %183 = vmatpush1.msra.mxu0 %v153
    %184 = vmatprep.subr.mxu0 0.0
    %185 = vmatpush1.msra.mxu0 %v154
    %186 = vmatprep.subr.mxu0 0.0
    %187 = vmatpush1.msra.mxu0 %v155
    %188 = vmatprep.subr.mxu0 0.0
    %189 = vmatpush1.msra.mxu0 0.0
    %190 = vmatprep.subr.mxu0 0.0
    %191 = vmatpush1.msra.mxu0 0.0
    %192 = vmatprep.subr.mxu0 0.0
    %193 = vmatpush1.msra.mxu0 0.0
    %194 = vmatprep.subr.mxu0 0.0
    %195 = vmatpush1.msra.mxu0 0.0
    %196 = vmatprep.subr.mxu0 0.0
    %197 = vmatpush1.msra.mxu0 0.0
    %198 = vmatprep.subr.mxu0 0.0
    %199 = vmatpush1.msra.mxu0 0.0
    %200 = vmatprep.subr.mxu0 0.0
    %201 = vmatpush1.msra.mxu0 0.0
    %202 = vmatprep.subr.mxu0 0.0
    %203 = vmatpush1.msra.mxu0 0.0
    %204 = vmatprep.subr.mxu0 0.0
    %205 = vmatpush1.msra.mxu0 0.0
    %206 = vmatprep.subr.mxu0 0.0
    %207 = vmatpush1.msra.mxu0 0.0
    %208 = vmatprep.subr.mxu0 0.0
    %209 = vmatpush1.msra.mxu0 0.0
    %210 = vmatprep.subr.mxu0 0.0
    %211 = vmatpush1.msra.mxu0 0.0
    %212 = vmatprep.subr.mxu0 0.0
    %213 = vmatpush1.msra.mxu0 0.0
    %214 = vmatprep.subr.mxu0 0.0
    %215 = vmatpush1.msra.mxu0 0.0
    %216 = vmatprep.subr.mxu0 0.0
    %217 = vmatpush1.msra.mxu0 0.0
    %218 = vmatprep.subr.mxu0 0.0
    %219 = vmatpush1.msra.mxu0 0.0
    %220 = vmatprep.mubr.f32.mxu0 0.0
    %221 = vmatmul.mubr.f32.gmra.mrb[0].mxu0 %v136
    %v222 = vpop.f32.mrb[0].mxu0
    %v223 = vadd.f32 0.0, %v222
    %v224 = vpop.f32.mrb[0].mxu0
    %225 = vmatprep.mubr.f32.mxu0 0.0
    %226 = vmatmul.mubr.f32.gmra.mrb[0].mxu0 %v137
    %v227 = vpop.f32.mrb[0].mxu0
    %v228 = vadd.f32 0.0, %v227
    %v229 = vpop.f32.mrb[0].mxu0
    %230 = vmatprep.mubr.f32.mxu0 0.0
    %231 = vmatmul.mubr.f32.gmra.mrb[0].mxu0 %v138
    %v232 = vpop.f32.mrb[0].mxu0
    %v233 = vadd.f32 0.0, %v232
    %v234 = vpop.f32.mrb[0].mxu0
    %235 = vmatprep.mubr.f32.mxu0 0.0
    %236 = vmatmul.mubr.f32.gmra.mrb[0].mxu0 %v139
    %v237 = vpop.f32.mrb[0].mxu0
    %v238 = vadd.f32 0.0, %v237
    %v239 = vpop.f32.mrb[0].mxu0
    %240 = vdwg.mxu0
    %241 = vst [vmem:[#allocation5] sm:$0xff] %v223
    %242 = vst [vmem:[#allocation5 + $0x8] sm:$0xff] %v228
    %243 = vst [vmem:[#allocation5 + $0x10] sm:$0xff] %v233
    %244 = vst [vmem:[#allocation5 + $0x18] sm:$0xff] %v238
    // Predicated region
    $region14: #{tpu_custom_call.1} parent=1 // pred_check
      _
    $region15: #{tpu_custom_call.1} parent=1 // pred_check_branch
      %246 = sbr.rel (0) target = $region17
    $region16: #{tpu_custom_call.1} parent=1 // pred_region
      %s248 = ssub.s32 512, 512
      %249 = vsyncadd [#allocation4], %s248
      %s250 = sshll.u32 [#allocation5], 4
      %s251 = int_to_ptr.vmem [resolvable:$true] %s250
      %256 = dma.vmem_to_hbm [thread:$0]  %s251, 512, %s2, [#allocation4], 128, 128, 8
    $region17: #{tpu_custom_call.1} parent=1 // pred_fallthru
      _
    // Predicated region
    $region18: #{tpu_custom_call.1} parent=1 // pred_check
      _
    $region19: #{tpu_custom_call.1} parent=1 // pred_check_branch
      %258 = sbr.rel (0) target = $region21
    $region20: #{tpu_custom_call.1} parent=1 // pred_region
      %259 = dma.done [#allocation4], 512
    $region21: #{tpu_custom_call.1} parent=1 // pred_fallthru
      _
    %260 = vsyncpa [#allocation3], 1
    %261 = vsyncpa [#allocation4], 1

// kernel: tpu_custom_call.1
$region0: #{tpu_custom_call.1}
  #allocation0 [shape = 'u32[]', space=smem, size = 0x4, offset = 0x4, fixed_abs, tag = 'smem constant byte address 0x4 - core index']
  #allocation1 [shape = 'u32[144,128]{1,0:T(1,128)}', space=vmem, size = 0x12000, scoped, tag = 'internal scratch']
  %s0 = inlined_call_operand.vmem [shape: s32[32,4], index: 0, kind: input, shape index: {}]
  %s1 = inlined_call_operand.hbm [shape: f32[128,128], index: 1, kind: input, shape index: {}]
  %s2 = inlined_call_operand.hbm [shape: f32[32,128], index: 2, kind: output, shape index: {}]
  %s3 = sld [smem:[#allocation0]]
  $region22: #{tpu_custom_call.1} parent=0
    _
  %s5 = ssub.s32 1, %s3
  %s6 = scalar_select 0, %s5, %s3
  $region1: #{tpu_custom_call.1} parent=0
    #allocation2 [shape = 'u8[65536]{0}', space=vmem, size = 0x10000, scoped, tag = 'input window, operand 1, single buffered']
    #allocation3 [shape = 's32[1]{0}', space=sflag, size = 0x4, scoped, tag = 'scoped memory for tpu_custom_call.1']
    #allocation4 [shape = 's32[1]{0}', space=sflag, size = 0x4, scoped, tag = 'scoped memory for tpu_custom_call.1']
    #allocation5 [shape = 'u8[16384]{0}', space=vmem, size = 0x4000, scoped, tag = 'output window, operand 0, single buffered']
    %7 = vsyncpa [#allocation3], 0
    %8 = vsyncpa [#allocation4], 0
    // Predicated region
    $region2: #{tpu_custom_call.1} parent=1 // pred_check
      _
    $region3: #{tpu_custom_call.1} parent=1 // pred_check_branch
      %10 = sbr.rel (0) target = $region5
    $region4: #{tpu_custom_call.1} parent=1 // pred_region
      _
    $region5: #{tpu_custom_call.1} parent=1 // pred_fallthru
      _
    // Predicated region
    $region6: #{tpu_custom_call.1} parent=1 // pred_check
      _
    $region7: #{tpu_custom_call.1} parent=1 // pred_check_branch
      %12 = sbr.rel (0) target = $region9
    $region8: #{tpu_custom_call.1} parent=1 // pred_region
      %s14 = ssub.s32 2048, 2048
      %15 = vsyncadd [#allocation3], %s14
      %s16 = sshll.u32 [#allocation2], 4
      %s17 = int_to_ptr.vmem [resolvable:$true] %s16
      %22 = dma.hbm_to_vmem [thread:$0]  %s1, 2048, %s17, [#allocation3], 128, 128, 8
    $region9: #{tpu_custom_call.1} parent=1 // pred_fallthru
      _
    // Predicated region
    $region10: #{tpu_custom_call.1} parent=1 // pred_check
      _
    $region11: #{tpu_custom_call.1} parent=1 // pred_check_branch
      %24 = sbr.rel (0) target = $region13
    $region12: #{tpu_custom_call.1} parent=1 // pred_region
      %25 = dma.done [#allocation3], 2048
    $region13: #{tpu_custom_call.1} parent=1 // pred_fallthru
      _
    %v26 = vld [vmem:[%s0] sm:$0xff]
    %v27 = vld [vmem:[%s0 + $0x8] sm:$0xff]
    %v28 = vld [vmem:[%s0 + $0x10] sm:$0xff]
    %v29 = vld [vmem:[%s0 + $0x18] sm:$0xff]
    %v30 = vlaneseq
    %v31 = vand.u32 %v30, 127
    %32 = vset.pattern.permute.xlu0 0
    %33 = vperm.xlu0 %32, %v26
    %v34 = vpop.permute.xlu0 %33
    %35 = vset.pattern.permute.xlu0 0
    %36 = vperm.xlu0 %35, %v27
    %v37 = vpop.permute.xlu0 %36
    %38 = vset.pattern.permute.xlu0 0
    %39 = vperm.xlu0 %38, %v28
    %v40 = vpop.permute.xlu0 %39
    %41 = vset.pattern.permute.xlu0 0
    %42 = vperm.xlu0 %41, %v29
    %v43 = vpop.permute.xlu0 %42
    %vm44 = vcmp.eq.s32.totalorder %v34, %v31
    %vm45 = vcmp.eq.s32.totalorder %v37, %v31
    %vm46 = vcmp.eq.s32.totalorder %v40, %v31
    %vm47 = vcmp.eq.s32.totalorder %v43, %v31
    %v48 = vsel %vm44, 1, 0
    %v49 = vsel %vm45, 1, 0
    %v50 = vsel %vm46, 1, 0
    %v51 = vsel %vm47, 1, 0
    %v52 = vcvt.s32.f32 %v48
    %v53 = vcvt.s32.f32 %v49
    %v54 = vcvt.s32.f32 %v50
    %v55 = vcvt.s32.f32 %v51
    %56 = vset.pattern.permute.xlu0 1
    %57 = vperm.xlu0 %56, %v26
    %v58 = vpop.permute.xlu0 %57
    %59 = vset.pattern.permute.xlu0 1
    %60 = vperm.xlu0 %59, %v27
    %v61 = vpop.permute.xlu0 %60
    %62 = vset.pattern.permute.xlu0 1
    %63 = vperm.xlu0 %62, %v28
    %v64 = vpop.permute.xlu0 %63
    %65 = vset.pattern.permute.xlu0 1
    %66 = vperm.xlu0 %65, %v29
    %v67 = vpop.permute.xlu0 %66
    %vm68 = vcmp.eq.s32.totalorder %v58, %v31
    %vm69 = vcmp.eq.s32.totalorder %v61, %v31
    %vm70 = vcmp.eq.s32.totalorder %v64, %v31
    %vm71 = vcmp.eq.s32.totalorder %v67, %v31
    %v72 = vsel %vm68, 1, 0
    %v73 = vsel %vm69, 1, 0
    %v74 = vsel %vm70, 1, 0
    %v75 = vsel %vm71, 1, 0
    %v76 = vcvt.s32.f32 %v72
    %v77 = vcvt.s32.f32 %v73
    %v78 = vcvt.s32.f32 %v74
    %v79 = vcvt.s32.f32 %v75
    %v80 = vadd.f32 %v52, %v76
    %v81 = vadd.f32 %v53, %v77
    %v82 = vadd.f32 %v54, %v78
    %v83 = vadd.f32 %v55, %v79
    %84 = vset.pattern.permute.xlu0 2
    %85 = vperm.xlu0 %84, %v26
    %v86 = vpop.permute.xlu0 %85
    %87 = vset.pattern.permute.xlu0 2
    %88 = vperm.xlu0 %87, %v27
    %v89 = vpop.permute.xlu0 %88
    %90 = vset.pattern.permute.xlu0 2
    %91 = vperm.xlu0 %90, %v28
    %v92 = vpop.permute.xlu0 %91
    %93 = vset.pattern.permute.xlu0 2
    %94 = vperm.xlu0 %93, %v29
    %v95 = vpop.permute.xlu0 %94
    %vm96 = vcmp.eq.s32.totalorder %v86, %v31
    %vm97 = vcmp.eq.s32.totalorder %v89, %v31
    %vm98 = vcmp.eq.s32.totalorder %v92, %v31
    %vm99 = vcmp.eq.s32.totalorder %v95, %v31
    %v100 = vsel %vm96, 1, 0
    %v101 = vsel %vm97, 1, 0
    %v102 = vsel %vm98, 1, 0
    %v103 = vsel %vm99, 1, 0
    %v104 = vcvt.s32.f32 %v100
    %v105 = vcvt.s32.f32 %v101
    %v106 = vcvt.s32.f32 %v102
    %v107 = vcvt.s32.f32 %v103
    %v108 = vadd.f32 %v80, %v104
    %v109 = vadd.f32 %v81, %v105
    %v110 = vadd.f32 %v82, %v106
    %v111 = vadd.f32 %v83, %v107
    %112 = vset.pattern.permute.xlu0 3
    %113 = vperm.xlu0 %112, %v26
    %v114 = vpop.permute.xlu0 %113
    %115 = vset.pattern.permute.xlu0 3
    %116 = vperm.xlu0 %115, %v27
    %v117 = vpop.permute.xlu0 %116
    %118 = vset.pattern.permute.xlu0 3
    %119 = vperm.xlu0 %118, %v28
    %v120 = vpop.permute.xlu0 %119
    %121 = vset.pattern.permute.xlu0 3
    %122 = vperm.xlu0 %121, %v29
    %v123 = vpop.permute.xlu0 %122
    %vm124 = vcmp.eq.s32.totalorder %v114, %v31
    %vm125 = vcmp.eq.s32.totalorder %v117, %v31
    %vm126 = vcmp.eq.s32.totalorder %v120, %v31
    %vm127 = vcmp.eq.s32.totalorder %v123, %v31
    %v128 = vsel %vm124, 1, 0
    %v129 = vsel %vm125, 1, 0
    %v130 = vsel %vm126, 1, 0
    %v131 = vsel %vm127, 1, 0
    %v132 = vcvt.s32.f32 %v128
    %v133 = vcvt.s32.f32 %v129
    %v134 = vcvt.s32.f32 %v130
    %v135 = vcvt.s32.f32 %v131
    %v136 = vadd.f32 %v108, %v132
    %v137 = vadd.f32 %v109, %v133
    %v138 = vadd.f32 %v110, %v134
    %v139 = vadd.f32 %v111, %v135
    %v140 = vld [vmem:[#allocation2] sm:$0xff]
    %v141 = vld [vmem:[#allocation2 + $0x8] sm:$0xff]
    %v142 = vld [vmem:[#allocation2 + $0x10] sm:$0xff]
    %v143 = vld [vmem:[#allocation2 + $0x18] sm:$0xff]
    %v144 = vld [vmem:[#allocation2 + $0x20] sm:$0xff]
    %v145 = vld [vmem:[#allocation2 + $0x28] sm:$0xff]
    %v146 = vld [vmem:[#allocation2 + $0x30] sm:$0xff]
    %v147 = vld [vmem:[#allocation2 + $0x38] sm:$0xff]
    %v148 = vld [vmem:[#allocation2 + $0x40] sm:$0xff]
    %v149 = vld [vmem:[#allocation2 + $0x48] sm:$0xff]
    %v150 = vld [vmem:[#allocation2 + $0x50] sm:$0xff]
    %v151 = vld [vmem:[#allocation2 + $0x58] sm:$0xff]
    %v152 = vld [vmem:[#allocation2 + $0x60] sm:$0xff]
    %v153 = vld [vmem:[#allocation2 + $0x68] sm:$0xff]
    %v154 = vld [vmem:[#allocation2 + $0x70] sm:$0xff]
    %v155 = vld [vmem:[#allocation2 + $0x78] sm:$0xff]
    %156 = vmatprep.subr.mxu0 0.0
    %157 = vmatpush1.msra.mxu0 %v140
    %158 = vmatprep.subr.mxu0 0.0
    %159 = vmatpush1.msra.mxu0 %v141
    %160 = vmatprep.subr.mxu0 0.0
    %161 = vmatpush1.msra.mxu0 %v142
    %162 = vmatprep.subr.mxu0 0.0
    %163 = vmatpush1.msra.mxu0 %v143
    %164 = vmatprep.subr.mxu0 0.0
    %165 = vmatpush1.msra.mxu0 %v144
    %166 = vmatprep.subr.mxu0 0.0
    %167 = vmatpush1.msra.mxu0 %v145
    %168 = vmatprep.subr.mxu0 0.0
    %169 = vmatpush1.msra.mxu0 %v146
    %170 = vmatprep.subr.mxu0 0.0
    %171 = vmatpush1.msra.mxu0 %v147
    %172 = vmatprep.subr.mxu0 0.0
    %173 = vmatpush1.msra.mxu0 %v148
    %174 = vmatprep.subr.mxu0 0.0
    %175 = vmatpush1.msra.mxu0 %v149
    %176 = vmatprep.subr.mxu0 0.0
    %177 = vmatpush1.msra.mxu0 %v150
    %178 = vmatprep.subr.mxu0 0.0
    %179 = vmatpush1.msra.mxu0 %v151
    %180 = vmatprep.subr.mxu0 0.0
    %181 = vmatpush1.msra.mxu0 %v152
    %182 = vmatprep.subr.mxu0 0.0
    %183 = vmatpush1.msra.mxu0 %v153
    %184 = vmatprep.subr.mxu0 0.0
    %185 = vmatpush1.msra.mxu0 %v154
    %186 = vmatprep.subr.mxu0 0.0
    %187 = vmatpush1.msra.mxu0 %v155
    %188 = vmatprep.subr.mxu0 0.0
    %189 = vmatpush1.msra.mxu0 0.0
    %190 = vmatprep.subr.mxu0 0.0
    %191 = vmatpush1.msra.mxu0 0.0
    %192 = vmatprep.subr.mxu0 0.0
    %193 = vmatpush1.msra.mxu0 0.0
    %194 = vmatprep.subr.mxu0 0.0
    %195 = vmatpush1.msra.mxu0 0.0
    %196 = vmatprep.subr.mxu0 0.0
    %197 = vmatpush1.msra.mxu0 0.0
    %198 = vmatprep.subr.mxu0 0.0
    %199 = vmatpush1.msra.mxu0 0.0
    %200 = vmatprep.subr.mxu0 0.0
    %201 = vmatpush1.msra.mxu0 0.0
    %202 = vmatprep.subr.mxu0 0.0
    %203 = vmatpush1.msra.mxu0 0.0
    %204 = vmatprep.subr.mxu0 0.0
    %205 = vmatpush1.msra.mxu0 0.0
    %206 = vmatprep.subr.mxu0 0.0
    %207 = vmatpush1.msra.mxu0 0.0
    %208 = vmatprep.subr.mxu0 0.0
    %209 = vmatpush1.msra.mxu0 0.0
    %210 = vmatprep.subr.mxu0 0.0
    %211 = vmatpush1.msra.mxu0 0.0
    %212 = vmatprep.subr.mxu0 0.0
    %213 = vmatpush1.msra.mxu0 0.0
    %214 = vmatprep.subr.mxu0 0.0
    %215 = vmatpush1.msra.mxu0 0.0
    %216 = vmatprep.subr.mxu0 0.0
    %217 = vmatpush1.msra.mxu0 0.0
    %218 = vmatprep.subr.mxu0 0.0
    %219 = vmatpush1.msra.mxu0 0.0
    %220 = vmatprep.mubr.f32.mxu0 0.0
    %221 = vmatmul.mubr.f32.gmra.mrb[0].mxu0 %v136
    %v222 = vpop.f32.mrb[0].mxu0
    %v223 = vadd.f32 0.0, %v222
    %v224 = vpop.f32.mrb[0].mxu0
    %225 = vmatprep.mubr.f32.mxu0 0.0
    %226 = vmatmul.mubr.f32.gmra.mrb[0].mxu0 %v137
    %v227 = vpop.f32.mrb[0].mxu0
    %v228 = vadd.f32 0.0, %v227
    %v229 = vpop.f32.mrb[0].mxu0
    %230 = vmatprep.mubr.f32.mxu0 0.0
    %231 = vmatmul.mubr.f32.gmra.mrb[0].mxu0 %v138
    %v232 = vpop.f32.mrb[0].mxu0
    %v233 = vadd.f32 0.0, %v232
    %v234 = vpop.f32.mrb[0].mxu0
    %235 = vmatprep.mubr.f32.mxu0 0.0
    %236 = vmatmul.mubr.f32.gmra.mrb[0].mxu0 %v139
    %v237 = vpop.f32.mrb[0].mxu0
    %v238 = vadd.f32 0.0, %v237
    %v239 = vpop.f32.mrb[0].mxu0
    %240 = vdwg.mxu0
    %241 = vst [vmem:[#allocation5] sm:$0xff] %v223
    %242 = vst [vmem:[#allocation5 + $0x8] sm:$0xff] %v228
    %243 = vst [vmem:[#allocation5 + $0x10] sm:$0xff] %v233
    %244 = vst [vmem:[#allocation5 + $0x18] sm:$0xff] %v238
    // Predicated region
    $region14: #{tpu_custom_call.1} parent=1 // pred_check
      _
    $region15: #{tpu_custom_call.1} parent=1 // pred_check_branch
      %246 = sbr.rel (0) target = $region17
    $region16: #{tpu_custom_call.1} parent=1 // pred_region
      %s248 = ssub.s32 512, 512
      %249 = vsyncadd [#allocation4], %s248
      %s250 = sshll.u32 [#allocation5], 4
      %s251 = int_to_ptr.vmem [resolvable:$true] %s250
      %256 = dma.vmem_to_hbm [thread:$0]  %s251, 512, %s2, [#allocation4], 128, 128, 8
    $region17: #{tpu_custom_call.1} parent=1 // pred_fallthru
      _
    // Predicated region
    $region18: #{tpu_custom_call.1} parent=1 // pred_check
      _
    $region19: #{tpu_custom_call.1} parent=1 // pred_check_branch
      %258 = sbr.rel (0) target = $region21
    $region20: #{tpu_custom_call.1} parent=1 // pred_region
      %259 = dma.done [#allocation4], 512
    $region21: #{tpu_custom_call.1} parent=1 // pred_fallthru
      _
    %260 = vsyncpa [#allocation3], 1
    %261 = vsyncpa [#allocation4], 1

</llo_original>
